<compile_context>
chip_gen: v5e
topology: v5e:2x2
jax: 0.10.0
libtpu: 0.0.40
codegen_flags: <defaults>
</compile_context>

<pallas_src>
import functools

import jax
import jax.numpy as jnp
from jax.experimental import pallas as pl
from jax.experimental.pallas import tpu as pltpu


def _postprocess_kernel(logits_ref, lines_ref, scale_ref,
                        scores_ref, labels_ref, slines_ref):
    # logits_ref : (B, C+1, TQ)  -- class on sublanes, query on lanes
    # lines_ref  : (B, 4,   TQ)
    # scale_ref  : (B, 4)
    logits = logits_ref[...].astype(jnp.float32)
    num_fg = logits.shape[1] - 1

    # ---- softmax pieces (no full prob materialization) ----
    m = jnp.max(logits, axis=1)                                   # (B, TQ)
    denom = jnp.sum(jnp.exp(logits - m[:, None, :]), axis=1)      # (B, TQ)

    # ---- foreground max / argmax on raw logits (softmax is monotone) ----
    cls_idx = jax.lax.broadcasted_iota(jnp.int32, logits.shape, dimension=1)
    is_fg = cls_idx < num_fg                                      # lane mask, no slice
    fg_logits = jnp.where(is_fg, logits, -jnp.inf)
    max_fg = jnp.max(fg_logits, axis=1)                           # (B, TQ)

    # scores = softmax(logits)[argmax_fg] = exp(max_fg - m) / sum(exp(logits - m))
    scores = jnp.exp(max_fg - m) * pl.reciprocal(denom, approx=True)

    # first-occurrence argmax (matches the original kernel's tie-breaking)
    is_max = fg_logits == max_fg[:, None, :]
    labels = jnp.min(jnp.where(is_max, cls_idx, num_fg), axis=1)  # (B, TQ)

    # ---- scale lines by [w, h, w, h]; broadcast along lanes (free) ----
    slines = (lines_ref[...].astype(jnp.float32)
              * scale_ref[...][:, :, None])

    scores_ref[...] = scores
    labels_ref[...] = labels.astype(jnp.int32)
    slines_ref[...] = slines.astype(slines_ref.dtype)


def _round_up(x, m):
    return ((x + m - 1) // m) * m


@functools.partial(jax.jit, static_argnames=("block_q",))
def _postprocess_line_arrays(pred_logits, pred_lines, target_sizes, block_q=512):
    """Returns stacked (scores [B,Q] f32, labels [B,Q] i32, lines [B,Q,4] f32)."""
    B, Q, C1 = pred_logits.shape
    assert pred_lines.shape == (B, Q, 4)
    assert pred_logits.shape[0] == target_sizes.shape[0], "shape mismatch"
    assert target_sizes.shape[1] == 2, "target_sizes must have shape (batch_size x 2)"

    img_h = target_sizes[:, 0].astype(jnp.float32)
    img_w = target_sizes[:, 1].astype(jnp.float32)
    scale_fct = jnp.stack([img_w, img_h, img_w, img_h], axis=1)   # (B, 4)

    # Lane-dense layout: queries -> lanes, classes / coords -> sublanes.
    # Native dtype is kept (no wrapper upcast); kernel upcasts to f32.
    logits_t = jnp.transpose(pred_logits, (0, 2, 1))              # (B, C+1, Q)
    lines_t = jnp.transpose(pred_lines, (0, 2, 1))                # (B, 4,   Q)

    q_pad = _round_up(Q, 128)
    if q_pad != Q:
        pad = ((0, 0), (0, 0), (0, q_pad - Q))
        logits_t = jnp.pad(logits_t, pad)
        lines_t = jnp.pad(lines_t, pad)

    # Pick the largest query tile <= block_q that divides q_pad (>= 128).
    tq = max(block_q, 128)
    while q_pad % tq:
        tq //= 2
    tq = max(tq, 128)
    grid = (q_pad // tq,)

    grid_spec = pltpu.PrefetchScalarGridSpec(
        num_scalar_prefetch=0,
        grid=grid,
        in_specs=[
            pl.BlockSpec((B, C1, tq), lambda q: (0, 0, q)),
            pl.BlockSpec((B, 4, tq), lambda q: (0, 0, q)),
            pl.BlockSpec((B, 4), lambda q: (0, 0)),
        ],
        out_specs=(
            pl.BlockSpec((B, tq), lambda q: (0, q)),
            pl.BlockSpec((B, tq), lambda q: (0, q)),
            pl.BlockSpec((B, 4, tq), lambda q: (0, 0, q)),
        ),
    )

    scores_p, labels_p, slines_t = pl.pallas_call(
        _postprocess_kernel,
        out_shape=(
            jax.ShapeDtypeStruct((B, q_pad), jnp.float32),
            jax.ShapeDtypeStruct((B, q_pad), jnp.int32),
            jax.ShapeDtypeStruct((B, 4, q_pad), jnp.float32),
        ),
        grid_spec=grid_spec,
        compiler_params=pltpu.CompilerParams(
            dimension_semantics=("parallel",)),
    )(logits_t, lines_t, scale_fct)

    scores = scores_p[:, :Q]
    labels = labels_p[:, :Q]
    lines = jnp.transpose(slines_t, (0, 2, 1))[:, :Q, :]
    return scores, labels, lines


def postprocess_line(pred_logits, pred_lines, target_sizes, primitive="shapes"):
    """JAX/Pallas equivalent of PostProcess_Line(output_type='prediction').

    Returns a dict of STACKED device arrays:
      {'scores': [B,Q] f32, 'labels': [B,Q] i32, primitive: [B,Q,4] f32}
    (Per-image splitting is deliberately left to the caller / done lazily —
     B tiny host-side slices would dominate end-to-end latency.)
    """
    scores, labels, lines = _postprocess_line_arrays(
        pred_logits, pred_lines, target_sizes)
    return {"scores": scores, "labels": labels, primitive: lines}


def postprocess_line_per_image(pred_logits, pred_lines, target_sizes,
                               primitive="shapes"):
    """Compatibility helper: list of per-image dicts like the PyTorch module."""
    out = postprocess_line(pred_logits, pred_lines, target_sizes, primitive)
    B = pred_logits.shape[0]
    return [{"scores": out["scores"][b], "labels": out["labels"][b],
             primitive: out[primitive][b]} for b in range(B)]


# TODO(synk): 'ground_truth' / 'prediction_POST' output_type branches are pure
# Python dict routing over variable-length per-image annotations; no Pallas
# equivalent, handle outside the kernel if needed.


if __name__ == "__main__":
    # Small deterministic synthetic inputs consistent with the module:
    # batch=2, num_queries=8, num_classes+1=16, lines have 4 coords.
    B, Q, C1 = 2, 8, 16
    key = jax.random.PRNGKey(0)
    k1, k2 = jax.random.split(key)
    pred_logits = jax.random.normal(k1, (B, Q, C1), dtype=jnp.float32)
    pred_lines = jax.random.uniform(k2, (B, Q, 4), dtype=jnp.float32)
    target_sizes = jnp.array([[480.0, 640.0], [300.0, 400.0]], dtype=jnp.float32)

    out = postprocess_line(pred_logits, pred_lines, target_sizes,
                           primitive="shapes")
    scores = jax.block_until_ready(out["scores"])
    labels = jax.block_until_ready(out["labels"])
    lines = jax.block_until_ready(out["shapes"])

    # Reference check in plain JAX (same math).
    prob = jax.nn.softmax(pred_logits, axis=-1)
    ref_scores = jnp.max(prob[..., :-1], axis=-1)
    ref_labels = jnp.argmax(prob[..., :-1], axis=-1).astype(jnp.int32)
    scale = jnp.stack([target_sizes[:, 1], target_sizes[:, 0],
                       target_sizes[:, 1], target_sizes[:, 0]], axis=1)
    ref_lines = pred_lines * scale[:, None, :]

    # approx reciprocal (EUP) -> slightly looser tolerance on scores.
    assert jnp.allclose(scores, ref_scores, rtol=5e-3, atol=1e-3)
    assert jnp.array_equal(labels, ref_labels)
    assert jnp.allclose(lines, ref_lines, rtol=1e-5, atol=1e-3)

    print("KERNEL_OK")
</pallas_src>

<mosaic_0001>
module attributes {stable_mosaic.version = 11 : i64} {
  func.func @_postprocess_kernel(%arg0: i32, %arg1: memref<2x16x128xf32, #tpu.memory_space<vmem>>, %arg2: memref<2x4x128xf32, #tpu.memory_space<vmem>>, %arg3: memref<2x4xf32, #tpu.memory_space<vmem>>, %arg4: memref<2x128xf32, #tpu.memory_space<vmem>>, %arg5: memref<2x128xi32, #tpu.memory_space<vmem>>, %arg6: memref<2x4x128xf32, #tpu.memory_space<vmem>>) attributes {dimension_semantics = [#tpu.dimension_semantics<parallel>], iteration_bounds = array<i64: 1>, scalar_prefetch = 0 : i64, scratch_operands = 0 : i64, tpu.core_type = #tpu.core_type<tc>, window_params = [{transform_indices = @transform_0, window_bounds = array<i64: 2, 16, 128>}, {transform_indices = @transform_1, window_bounds = array<i64: 2, 4, 128>}, {pipeline_mode = #tpu.pipeline_mode<synchronous>, transform_indices = @transform_2, window_bounds = array<i64: 2, 4>}, {transform_indices = @transform_3, window_bounds = array<i64: 2, 128>}, {transform_indices = @transform_4, window_bounds = array<i64: 2, 128>}, {transform_indices = @transform_5, window_bounds = array<i64: 2, 4, 128>}]} {
    %c0 = arith.constant 0 : index
    %c0_0 = arith.constant 0 : index
    %c0_1 = arith.constant 0 : index
    %0 = vector.load %arg1[%c0, %c0_0, %c0_1] : memref<2x16x128xf32, #tpu.memory_space<vmem>>, vector<2x16x128xf32>
    %cst = arith.constant dense<0xFF800000> : vector<2x128xf32>
    %1 = vector.multi_reduction <maximumf>, %0, %cst [1] : vector<2x16x128xf32> to vector<2x128xf32>
    %2 = vector.shape_cast %1 : vector<2x128xf32> to vector<2x1x128xf32>
    %3 = vector.broadcast %2 : vector<2x1x128xf32> to vector<2x16x128xf32>
    %4 = arith.subf %0, %3 : vector<2x16x128xf32>
    %5 = math.exp %4 : vector<2x16x128xf32>
    %cst_2 = arith.constant dense<0.000000e+00> : vector<2x128xf32>
    %6 = vector.multi_reduction <add>, %5, %cst_2 [1] : vector<2x16x128xf32> to vector<2x128xf32>
    %7 = tpu.iota {dimensions = array<i32: 1>} : vector<2x16x128xi32>
    %c15_i32 = arith.constant 15 : i32
    %8 = vector.broadcast %c15_i32 : i32 to vector<2x16x128xi32>
    %9 = arith.cmpi slt, %7, %8 : vector<2x16x128xi32>
    %cst_3 = arith.constant 0xFF800000 : f32
    %10 = vector.broadcast %cst_3 : f32 to vector<2x16x128xf32>
    %11 = arith.select %9, %0, %10 : vector<2x16x128xi1>, vector<2x16x128xf32>
    %cst_4 = arith.constant dense<0xFF800000> : vector<2x128xf32>
    %12 = vector.multi_reduction <maximumf>, %11, %cst_4 [1] : vector<2x16x128xf32> to vector<2x128xf32>
    %13 = arith.subf %12, %1 : vector<2x128xf32>
    %14 = math.exp %13 : vector<2x128xf32>
    %15 = tpu.reciprocal %6 {approx = true} : vector<2x128xf32> -> vector<2x128xf32>
    %16 = arith.mulf %14, %15 : vector<2x128xf32>
    %17 = vector.shape_cast %12 : vector<2x128xf32> to vector<2x1x128xf32>
    %18 = vector.broadcast %17 : vector<2x1x128xf32> to vector<2x16x128xf32>
    %19 = arith.cmpf oeq, %11, %18 : vector<2x16x128xf32>
    %c15_i32_5 = arith.constant 15 : i32
    %20 = vector.broadcast %c15_i32_5 : i32 to vector<2x16x128xi32>
    %21 = arith.select %19, %7, %20 : vector<2x16x128xi1>, vector<2x16x128xi32>
    %cst_6 = arith.constant dense<2147483647> : vector<2x128xi32>
    %22 = vector.multi_reduction <minsi>, %21, %cst_6 [1] : vector<2x16x128xi32> to vector<2x128xi32>
    %c0_7 = arith.constant 0 : index
    %c0_8 = arith.constant 0 : index
    %c0_9 = arith.constant 0 : index
    %23 = vector.load %arg2[%c0_7, %c0_8, %c0_9] : memref<2x4x128xf32, #tpu.memory_space<vmem>>, vector<2x4x128xf32>
    %c0_10 = arith.constant 0 : index
    %c0_11 = arith.constant 0 : index
    %24 = vector.load %arg3[%c0_10, %c0_11] : memref<2x4xf32, #tpu.memory_space<vmem>>, vector<2x4xf32>
    %25 = vector.shape_cast %24 : vector<2x4xf32> to vector<2x4x1xf32>
    %26 = vector.broadcast %25 : vector<2x4x1xf32> to vector<2x4x128xf32>
    %27 = arith.mulf %23, %26 : vector<2x4x128xf32>
    %c0_12 = arith.constant 0 : index
    %c0_13 = arith.constant 0 : index
    %28 = vector.load %arg4[%c0_12, %c0_13] : memref<2x128xf32, #tpu.memory_space<vmem>>, vector<2x128xf32>
    tpu.vector_store %arg4[%c0_12, %c0_13], %16 {strides = array<i32>} : memref<2x128xf32, #tpu.memory_space<vmem>>, vector<2x128xf32>,
    %c0_14 = arith.constant 0 : index
    %c0_15 = arith.constant 0 : index
    %29 = vector.load %arg5[%c0_14, %c0_15] : memref<2x128xi32, #tpu.memory_space<vmem>>, vector<2x128xi32>
    tpu.vector_store %arg5[%c0_14, %c0_15], %22 {strides = array<i32>} : memref<2x128xi32, #tpu.memory_space<vmem>>, vector<2x128xi32>,
    %c0_16 = arith.constant 0 : index
    %c0_17 = arith.constant 0 : index
    %c0_18 = arith.constant 0 : index
    %30 = vector.load %arg6[%c0_16, %c0_17, %c0_18] : memref<2x4x128xf32, #tpu.memory_space<vmem>>, vector<2x4x128xf32>
    tpu.vector_store %arg6[%c0_16, %c0_17, %c0_18], %27 {strides = array<i32>} : memref<2x4x128xf32, #tpu.memory_space<vmem>>, vector<2x4x128xf32>,
    return
  }
  func.func @transform_0(%arg0: i32) -> (i32, i32, i32) {
    %c0_i32 = arith.constant 0 : i32
    %c0_i32_0 = arith.constant 0 : i32
    %c0_i32_1 = arith.constant 0 : i32
    return %c0_i32, %c0_i32_0, %arg0 : i32, i32, i32
  }
  func.func @transform_1(%arg0: i32) -> (i32, i32, i32) {
    %c0_i32 = arith.constant 0 : i32
    %c0_i32_0 = arith.constant 0 : i32
    %c0_i32_1 = arith.constant 0 : i32
    return %c0_i32, %c0_i32_0, %arg0 : i32, i32, i32
  }
  func.func @transform_2(%arg0: i32) -> (i32, i32) {
    %c0_i32 = arith.constant 0 : i32
    %c0_i32_0 = arith.constant 0 : i32
    %c0_i32_1 = arith.constant 0 : i32
    return %c0_i32, %c0_i32_0 : i32, i32
  }
  func.func @transform_3(%arg0: i32) -> (i32, i32) {
    %c0_i32 = arith.constant 0 : i32
    %c0_i32_0 = arith.constant 0 : i32
    return %c0_i32, %arg0 : i32, i32
  }
  func.func @transform_4(%arg0: i32) -> (i32, i32) {
    %c0_i32 = arith.constant 0 : i32
    %c0_i32_0 = arith.constant 0 : i32
    return %c0_i32, %arg0 : i32, i32
  }
  func.func @transform_5(%arg0: i32) -> (i32, i32, i32) {
    %c0_i32 = arith.constant 0 : i32
    %c0_i32_0 = arith.constant 0 : i32
    %c0_i32_1 = arith.constant 0 : i32
    return %c0_i32, %c0_i32_0, %arg0 : i32, i32, i32
  }
}

</mosaic_0001>

<llo_original>
// kernel: _postprocess_line_arrays.1
$region0: #{_postprocess_line_arrays.1}
  #allocation0 [shape = 'u32[]', space=smem, size = 0x4, offset = 0x4, fixed_abs, tag = 'smem constant byte address 0x4 - core index']
  #allocation1 [shape = 'u32[72,128]{1,0:T(1,128)}', space=vmem, size = 0x9000, scoped, tag = 'internal scratch']
  %s0 = inlined_call_operand.vmem [shape: f32[2,16,128], index: 0, kind: input, shape index: {}]
  %s1 = inlined_call_operand.vmem [shape: f32[2,4,128], index: 1, kind: input, shape index: {}]
  %s2 = inlined_call_operand.vmem [shape: f32[2,4], index: 2, kind: input, shape index: {}]
  %s3 = inlined_call_operand.hbm [shape: f32[2,128], index: 3, kind: output, shape index: {0}]
  %s4 = inlined_call_operand.hbm [shape: s32[2,128], index: 4, kind: output, shape index: {1}]
  %s5 = inlined_call_operand.hbm [shape: f32[2,4,128], index: 5, kind: output, shape index: {2}]
  %6 = xla_tuple %s3, %s4, %s5
  %s7 = sld [smem:[#allocation0]]
  $region38: #{_postprocess_line_arrays.1} parent=0
    _
  %s9 = ssub.s32 1, %s7
  %s10 = scalar_select 0, %s9, %s7
  $region1: #{_postprocess_line_arrays.1} parent=0
    #allocation2 [shape = 'u8[1024]{0}', space=vmem, size = 0x400, scoped, tag = 'output window, operand 0, single buffered']
    #allocation3 [shape = 's32[1]{0}', space=sflag, size = 0x4, scoped, tag = 'scoped memory for _postprocess_line_arrays.1']
    #allocation4 [shape = 'u8[1024]{0}', space=vmem, size = 0x400, scoped, tag = 'output window, operand 1, single buffered']
    #allocation5 [shape = 's32[1]{0}', space=sflag, size = 0x4, scoped, tag = 'scoped memory for _postprocess_line_arrays.1']
    #allocation6 [shape = 'u8[4096]{0}', space=vmem, size = 0x1000, scoped, tag = 'output window, operand 2, single buffered']
    %11 = vsyncpa [#allocation3], 0
    %12 = vsyncpa [#allocation5], 0
    // Predicated region
    $region2: #{_postprocess_line_arrays.1} parent=1 // pred_check
      _
    $region3: #{_postprocess_line_arrays.1} parent=1 // pred_check_branch
      %14 = sbr.rel (0) target = $region5
    $region4: #{_postprocess_line_arrays.1} parent=1 // pred_region
      _
    $region5: #{_postprocess_line_arrays.1} parent=1 // pred_fallthru
      _
    // Predicated region
    $region6: #{_postprocess_line_arrays.1} parent=1 // pred_check
      _
    $region7: #{_postprocess_line_arrays.1} parent=1 // pred_check_branch
      %16 = sbr.rel (0) target = $region9
    $region8: #{_postprocess_line_arrays.1} parent=1 // pred_region
      _
    $region9: #{_postprocess_line_arrays.1} parent=1 // pred_fallthru
      _
    // Predicated region
    $region10: #{_postprocess_line_arrays.1} parent=1 // pred_check
      _
    $region11: #{_postprocess_line_arrays.1} parent=1 // pred_check_branch
      %18 = sbr.rel (0) target = $region13
    $region12: #{_postprocess_line_arrays.1} parent=1 // pred_region
      _
    $region13: #{_postprocess_line_arrays.1} parent=1 // pred_fallthru
      _
    %v19 = vld [vmem:[%s0] sm:$0xff]
    %v20 = vld [vmem:[%s0 + $0x8] sm:$0xff]
    %v21 = vld [vmem:[%s0 + $0x10] sm:$0xff]
    %v22 = vld [vmem:[%s0 + $0x18] sm:$0xff]
    %v23 = vmax.f32 %v19, %v20
    %v24 = vrot.slane %v23, 4
    %v25 = vmax.f32 %v23, %v24
    %v26 = vrot.slane %v25, 2
    %v27 = vmax.f32 %v25, %v26
    %v28 = vrot.slane %v27, 1
    %v29 = vmax.f32 %v27, %v28
    %v30 = vmax.f32 %v21, %v22
    %v31 = vrot.slane %v30, 4
    %v32 = vmax.f32 %v30, %v31
    %v33 = vrot.slane %v32, 2
    %v34 = vmax.f32 %v32, %v33
    %v35 = vrot.slane %v34, 1
    %v36 = vmax.f32 %v34, %v35
    %v37 = vsub.f32 %v19, %v29
    %v38 = vsub.f32 %v20, %v29
    %v39 = vsub.f32 %v21, %v36
    %v40 = vsub.f32 %v22, %v36
    %v41 = vmul.f32 %v37, 1.442695
    %v42 = vpow.pop %v41
    %v43 = vmul.f32 %v38, 1.442695
    %v44 = vpow.pop %v43
    %v45 = vmul.f32 %v39, 1.442695
    %v46 = vpow.pop %v45
    %v47 = vmul.f32 %v40, 1.442695
    %v48 = vpow.pop %v47
    %v49 = vadd.f32 %v42, %v44
    %v50 = vrot.slane %v49, 4
    %v51 = vadd.f32 %v49, %v50
    %v52 = vrot.slane %v51, 2
    %v53 = vadd.f32 %v51, %v52
    %v54 = vrot.slane %v53, 1
    %v55 = vadd.f32 %v53, %v54
    %v56 = vadd.f32 %v46, %v48
    %v57 = vrot.slane %v56, 4
    %v58 = vadd.f32 %v56, %v57
    %v59 = vrot.slane %v58, 2
    %v60 = vadd.f32 %v58, %v59
    %v61 = vrot.slane %v60, 1
    %v62 = vadd.f32 %v60, %v61
    %v63 = vlaneseq
    %v64 = vshrl.u32 %v63, 7
    %v65 = vadd.s32 %v64, 8
    %vm66 = vcmp.lt.s32.totalorder %v64, 15
    %vm67 = vcmp.lt.s32.totalorder %v65, 15
    %v68 = vsel %vm66, %v19, -inf
    %v69 = vsel %vm67, %v20, -inf
    %v70 = vsel %vm66, %v21, -inf
    %v71 = vsel %vm67, %v22, -inf
    %v72 = vmax.f32 %v68, %v69
    %v73 = vrot.slane %v72, 4
    %v74 = vmax.f32 %v72, %v73
    %v75 = vrot.slane %v74, 2
    %v76 = vmax.f32 %v74, %v75
    %v77 = vrot.slane %v76, 1
    %v78 = vmax.f32 %v76, %v77
    %v79 = vmax.f32 %v70, %v71
    %v80 = vrot.slane %v79, 4
    %v81 = vmax.f32 %v79, %v80
    %v82 = vrot.slane %v81, 2
    %v83 = vmax.f32 %v81, %v82
    %v84 = vrot.slane %v83, 1
    %v85 = vmax.f32 %v83, %v84
    %v86 = vsub.f32 %v78, %v29
    %v87 = vsub.f32 %v85, %v36
    %v88 = vmul.f32 %v86, 1.442695
    %v89 = vpow.pop %v88
    %v90 = vmul.f32 %v87, 1.442695
    %v91 = vpow.pop %v90
    %v92 = vrcp.pop %v55
    %v93 = vrcp.pop %v62
    %v94 = vmul.f32 %v89, %v92
    %v95 = vmul.f32 %v91, %v93
    %vm96 = vcmp.eq.f32.partialorder %v68, %v78
    %vm97 = vcmp.eq.f32.partialorder %v69, %v78
    %vm98 = vcmp.eq.f32.partialorder %v70, %v85
    %vm99 = vcmp.eq.f32.partialorder %v71, %v85
    %v100 = vsel %vm96, %v64, 15
    %v101 = vsel %vm97, %v65, 15
    %v102 = vsel %vm98, %v64, 15
    %v103 = vsel %vm99, %v65, 15
    %vm104 = vcmp.lt.s32.totalorder %v100, %v101
    %v105 = vsel %vm104, %v100, %v101
    %v106 = vrot.slane %v105, 4
    %vm107 = vcmp.lt.s32.totalorder %v105, %v106
    %v108 = vsel %vm107, %v105, %v106
    %v109 = vrot.slane %v108, 2
    %vm110 = vcmp.lt.s32.totalorder %v108, %v109
    %v111 = vsel %vm110, %v108, %v109
    %v112 = vrot.slane %v111, 1
    %vm113 = vcmp.lt.s32.totalorder %v111, %v112
    %v114 = vsel %vm113, %v111, %v112
    %vm115 = vcmp.lt.s32.totalorder %v102, %v103
    %v116 = vsel %vm115, %v102, %v103
    %v117 = vrot.slane %v116, 4
    %vm118 = vcmp.lt.s32.totalorder %v116, %v117
    %v119 = vsel %vm118, %v116, %v117
    %v120 = vrot.slane %v119, 2
    %vm121 = vcmp.lt.s32.totalorder %v119, %v120
    %v122 = vsel %vm121, %v119, %v120
    %v123 = vrot.slane %v122, 1
    %vm124 = vcmp.lt.s32.totalorder %v122, %v123
    %v125 = vsel %vm124, %v122, %v123
    %v126 = vld [vmem:[%s1] sm:$0xf]
    %v127 = vld [vmem:[%s1 + $0x4] sm:$0xf]
    %v128 = vld [vmem:[%s2] sm:$0x3]
    %v129 = vperm.slane %v128, 0
    %v130 = vlaneseq
    %v131 = vshrl.u32 %v130, 7
    %133 = vset.pattern.permute.xlu0 %v131
    %134 = vperm.xlu0 %133, %v129
    %v135 = vpop.permute.xlu0 %134
    %v136 = vperm.slane %v128, 1
    %v137 = vlaneseq
    %v138 = vshrl.u32 %v137, 7
    %140 = vset.pattern.permute.xlu0 %v138
    %141 = vperm.xlu0 %140, %v136
    %v142 = vpop.permute.xlu0 %141
    %v143 = vmul.f32 %v126, %v135
    %v144 = vmul.f32 %v127, %v142
    %vm147 = vcmask 1041409
    %v148 = vsel %vm147, %v95, %v94
    %150 = vst [vmem:[#allocation2] sm:$0x3] %v148
    %v151 = vsel %vm147, %v125, %v114
    %152 = vst [vmem:[#allocation4] sm:$0x3] %v151
    %153 = vst [vmem:[#allocation6] sm:$0xf] %v143
    %154 = vst [vmem:[#allocation6 + $0x4] sm:$0xf] %v144
    // Predicated region
    $region14: #{_postprocess_line_arrays.1} parent=1 // pred_check
      _
    $region15: #{_postprocess_line_arrays.1} parent=1 // pred_check_branch
      %156 = sbr.rel (0) target = $region17
    $region16: #{_postprocess_line_arrays.1} parent=1 // pred_region
      %158 = vsyncadd [#allocation3], 0
      %s160 = sshll.u32 [#allocation2], 4
      %s161 = int_to_ptr.vmem [resolvable:$true] %s160
      %s162 = sshll.u32 %s3, 4
      %s163 = int_to_ptr.hbm [resolvable:$true] %s162
      %165 = dma.vmem_to_hbm [thread:$0]  %s161, 32, %s163, [#allocation3]
    $region17: #{_postprocess_line_arrays.1} parent=1 // pred_fallthru
      _
    // Predicated region
    $region18: #{_postprocess_line_arrays.1} parent=1 // pred_check
      _
    $region19: #{_postprocess_line_arrays.1} parent=1 // pred_check_branch
      %167 = sbr.rel (0) target = $region21
    $region20: #{_postprocess_line_arrays.1} parent=1 // pred_region
      %169 = vsyncadd [#allocation5], 0
      %s171 = sshll.u32 [#allocation4], 4
      %s172 = int_to_ptr.vmem [resolvable:$true] %s171
      %s173 = sshll.u32 %s4, 4
      %s174 = int_to_ptr.hbm [resolvable:$true] %s173
      %176 = dma.vmem_to_hbm [thread:$0]  %s172, 32, %s174, [#allocation5]
    $region21: #{_postprocess_line_arrays.1} parent=1 // pred_fallthru
      _
    // Predicated region
    $region22: #{_postprocess_line_arrays.1} parent=1 // pred_check
      _
    $region23: #{_postprocess_line_arrays.1} parent=1 // pred_check_branch
      %178 = sbr.rel (0) target = $region25
    $region24: #{_postprocess_line_arrays.1} parent=1 // pred_region
      %180 = vsyncadd [#allocation5], 0
      %s181 = sshll.u32 [#allocation6], 4
      %s182 = int_to_ptr.vmem [resolvable:$true] %s181
      %s183 = sshll.u32 %s5, 4
      %s184 = int_to_ptr.hbm [resolvable:$true] %s183
      %189 = dma.vmem_to_hbm [thread:$0]  %s182, 128, %s184, [#allocation5], 64, 64, 4
    $region25: #{_postprocess_line_arrays.1} parent=1 // pred_fallthru
      _
    // Predicated region
    $region26: #{_postprocess_line_arrays.1} parent=1 // pred_check
      _
    $region27: #{_postprocess_line_arrays.1} parent=1 // pred_check_branch
      %191 = sbr.rel (0) target = $region29
    $region28: #{_postprocess_line_arrays.1} parent=1 // pred_region
      %193 = dma.done [#allocation3], 32
    $region29: #{_postprocess_line_arrays.1} parent=1 // pred_fallthru
      _
    // Predicated region
    $region30: #{_postprocess_line_arrays.1} parent=1 // pred_check
      _
    $region31: #{_postprocess_line_arrays.1} parent=1 // pred_check_branch
      %195 = sbr.rel (0) target = $region33
    $region32: #{_postprocess_line_arrays.1} parent=1 // pred_region
      %197 = dma.done [#allocation5], 32
    $region33: #{_postprocess_line_arrays.1} parent=1 // pred_fallthru
      _
    // Predicated region
    $region34: #{_postprocess_line_arrays.1} parent=1 // pred_check
      _
    $region35: #{_postprocess_line_arrays.1} parent=1 // pred_check_branch
      %199 = sbr.rel (0) target = $region37
    $region36: #{_postprocess_line_arrays.1} parent=1 // pred_region
      %201 = dma.done [#allocation5], 128
    $region37: #{_postprocess_line_arrays.1} parent=1 // pred_fallthru
      _
    %202 = vsyncpa [#allocation3], 1
    %203 = vsyncpa [#allocation5], 1

</llo_original>
